<compile_context>
chip_gen: v7x
topology: tpu7x:2x2x1
jax: 0.10.0
libtpu: 0.0.40
codegen_flags: <defaults>
</compile_context>

<pallas_src>
import jax
import jax.numpy as jnp
from jax.experimental import pallas as pl
from jax.experimental.pallas import tpu as pltpu

LANE = 128
SUBLANE = 8


def _round_up(x, m):
    return (x + m - 1) // m * m


# ---------------------------------------------------------------------------
# shared per-step math (operates on already-loaded arrays)
# ---------------------------------------------------------------------------
def _gru_linear_step(x, h, wih_t, whh_t, b_comb, bhh_n, w_pm, b_pm):
    """One GRUCell + Linear(H->2) + softmax step.

    x      : (Bt, 2)    spin input (one-hot in the model, but math is exact
                        for any values)
    h      : (Bt, Hp)   previous hidden state, lane-padded, pad lanes == 0
    wih_t  : (2, 3Hp)   input weights, per-gate blocks [r|z|n], transposed
    whh_t  : (Hp, 3Hp)  hidden weights, per-gate blocks, transposed
    b_comb : (1, 3Hp)   [b_ir+b_hr | b_iz+b_hz | b_in]
    bhh_n  : (1, Hp)    b_hn (kept separate: n = tanh(i_n + r*(h_n + b_hn)))
    w_pm   : (Hp, 128)  col0 = w0-w1, col1 = w1-w0 of the Linear head, rest 0
    b_pm   : (1, 128)   col0 = b0-b1, col1 = b1-b0, padded cols = -1e30
    returns new_h (Bt, Hp), probs_slab (Bt, 128) with col0=p0, col1=p1, rest 0
    """
    Hp = h.shape[1]

    # Input projection as a 2-term linear combination on the VPU (no MXU push
    # for a K=2 contraction).
    x0 = x[:, 0:1]
    x1 = x[:, 1:2]
    gi = x0 * wih_t[0:1, :] + x1 * wih_t[1:2, :] + b_comb        # (Bt, 3Hp)

    # Hidden projection: one wide MXU matmul; gate slices below are at
    # multiples of Hp (>=128) -> lane-group aligned, no XLU shuffles.
    gh = jnp.dot(h, whh_t, preferred_element_type=jnp.float32)   # (Bt, 3Hp)

    # PyTorch GRUCell gate order: r, z, n
    r = jax.nn.sigmoid(gi[:, 0:Hp] + gh[:, 0:Hp])
    z = jax.nn.sigmoid(gi[:, Hp:2 * Hp] + gh[:, Hp:2 * Hp])
    n = jnp.tanh(gi[:, 2 * Hp:3 * Hp] + r * (gh[:, 2 * Hp:3 * Hp] + bhh_n))
    new_h = (1.0 - z) * n + z * h                                # (Bt, Hp)

    # Linear(H->2) + softmax(dim=1) == sigmoid of the logit difference:
    #   p1 = sigmoid(l1 - l0), p0 = sigmoid(l0 - l1).
    # Padded columns get bias -1e30 -> sigmoid -> 0 (lane-dense output slab).
    diff = jnp.dot(new_h, w_pm, preferred_element_type=jnp.float32) + b_pm
    probs = jax.nn.sigmoid(diff)                                 # (Bt, 128)
    return new_h, probs


# ---------------------------------------------------------------------------
# single-step kernel  (== RNN.forward)
# ---------------------------------------------------------------------------
def _rnn_step_kernel(spin_ref, h_ref, wih_ref, whh_ref, bcomb_ref, bhhn_ref,
                     wpm_ref, bpm_ref, newh_ref, prob_ref):
    new_h, probs = _gru_linear_step(
        spin_ref[...].astype(jnp.float32), h_ref[...],
        wih_ref[...], whh_ref[...], bcomb_ref[...], bhhn_ref[...],
        wpm_ref[...], bpm_ref[...])
    newh_ref[...] = new_h
    prob_ref[...] = probs


def rnn_forward(spin, hidden_vec, params):
    """Pallas equivalent of RNN.forward(spin, hidden_vec) -> (new_h, probs)."""
    B, H = hidden_vec.shape
    Hp = params["Hp"]
    BT = 128 if B >= 128 else _round_up(max(B, SUBLANE), SUBLANE)
    Bp = _round_up(B, BT)

    spin_p = jnp.zeros((Bp, 2), jnp.float32).at[:B].set(spin.astype(jnp.float32))
    h_p = jnp.zeros((Bp, Hp), jnp.float32).at[:B, :H].set(
        hidden_vec.astype(jnp.float32))

    new_h_p, probs_p = pl.pallas_call(
        _rnn_step_kernel,
        out_shape=(jax.ShapeDtypeStruct((Bp, Hp), jnp.float32),
                   jax.ShapeDtypeStruct((Bp, LANE), jnp.float32)),
        grid=(Bp // BT,),
        in_specs=[
            pl.BlockSpec((BT, 2), lambda i: (i, 0)),
            pl.BlockSpec((BT, Hp), lambda i: (i, 0)),
            pl.BlockSpec((2, 3 * Hp), lambda i: (0, 0)),
            pl.BlockSpec((Hp, 3 * Hp), lambda i: (0, 0)),
            pl.BlockSpec((1, 3 * Hp), lambda i: (0, 0)),
            pl.BlockSpec((1, Hp), lambda i: (0, 0)),
            pl.BlockSpec((Hp, LANE), lambda i: (0, 0)),
            pl.BlockSpec((1, LANE), lambda i: (0, 0)),
        ],
        out_specs=(pl.BlockSpec((BT, Hp), lambda i: (i, 0)),
                   pl.BlockSpec((BT, LANE), lambda i: (i, 0))),
        compiler_params=pltpu.CompilerParams(
            dimension_semantics=("parallel",)),
    )(spin_p, h_p, params["wih_t"], params["whh_t"], params["b_comb"],
      params["bhh_n"], params["w_pm"], params["b_pm"])

    return new_h_p[:B, :H], probs_p[:B, :2]


# ---------------------------------------------------------------------------
# fused multi-step kernel: whole recurrent loop in ONE pallas_call
# (hidden state in VMEM scratch, weights resident, per-step probs -> slab)
# ---------------------------------------------------------------------------
def _rnn_scan_kernel(spins_ref, h0_ref, wih_ref, whh_ref, bcomb_ref, bhhn_ref,
                     wpm_ref, bpm_ref, probs_ref, hT_ref, h_scratch):
    T = spins_ref.shape[0]
    h_scratch[...] = h0_ref[...]

    @pl.loop(0, T)
    def _(t):
        x = spins_ref[t]                              # (BT, 2) dynamic load
        new_h, probs = _gru_linear_step(
            x.astype(jnp.float32), h_scratch[...],
            wih_ref[...], whh_ref[...], bcomb_ref[...], bhhn_ref[...],
            wpm_ref[...], bpm_ref[...])
        probs_ref[t] = probs                          # resident output slab
        h_scratch[...] = new_h                        # h never leaves VMEM

    hT_ref[...] = h_scratch[...]


def rnn_scan(spins_onehot, h0, params):
    """Run T sequential forward() steps in a single kernel.

    spins_onehot: (T, B, 2) one-hot spins fed at each step (training/data path
    of get_samples_and_probs).  Returns (probs (T,B,2), final hidden (B,H)).
    """
    T, B, _ = spins_onehot.shape
    H = h0.shape[1]
    Hp = params["Hp"]
    BT = 128 if B >= 128 else _round_up(max(B, SUBLANE), SUBLANE)
    Bp = _round_up(B, BT)

    spins_p = jnp.zeros((T, Bp, 2), jnp.float32).at[:, :B].set(
        spins_onehot.astype(jnp.float32))
    h0_p = jnp.zeros((Bp, Hp), jnp.float32).at[:B, :H].set(h0.astype(jnp.float32))

    flops = int(2 * T * Bp * Hp * (3 * Hp + LANE))
    transcendentals = int(T * Bp * (3 * Hp + LANE))
    bytes_accessed = int(4 * (spins_p.size + h0_p.size
                              + params["wih_t"].size + params["whh_t"].size
                              + params["b_comb"].size + params["bhh_n"].size
                              + params["w_pm"].size + params["b_pm"].size
                              + T * Bp * LANE + Bp * Hp))

    probs_p, hT_p = pl.pallas_call(
        _rnn_scan_kernel,
        out_shape=(jax.ShapeDtypeStruct((T, Bp, LANE), jnp.float32),
                   jax.ShapeDtypeStruct((Bp, Hp), jnp.float32)),
        grid=(Bp // BT,),
        in_specs=[
            pl.BlockSpec((T, BT, 2), lambda i: (0, i, 0)),
            pl.BlockSpec((BT, Hp), lambda i: (i, 0)),
            pl.BlockSpec((2, 3 * Hp), lambda i: (0, 0)),
            pl.BlockSpec((Hp, 3 * Hp), lambda i: (0, 0)),
            pl.BlockSpec((1, 3 * Hp), lambda i: (0, 0)),
            pl.BlockSpec((1, Hp), lambda i: (0, 0)),
            pl.BlockSpec((Hp, LANE), lambda i: (0, 0)),
            pl.BlockSpec((1, LANE), lambda i: (0, 0)),
        ],
        out_specs=(pl.BlockSpec((T, BT, LANE), lambda i: (0, i, 0)),
                   pl.BlockSpec((BT, Hp), lambda i: (i, 0))),
        scratch_shapes=[pltpu.VMEM((BT, Hp), jnp.float32)],
        compiler_params=pltpu.CompilerParams(
            dimension_semantics=("parallel",)),
        cost_estimate=pl.CostEstimate(flops=flops,
                                      transcendentals=transcendentals,
                                      bytes_accessed=bytes_accessed),
    )(spins_p, h0_p, params["wih_t"], params["whh_t"], params["b_comb"],
      params["bhh_n"], params["w_pm"], params["b_pm"])

    return probs_p[:, :B, :2], hT_p[:B, :H]


# ---------------------------------------------------------------------------
# parameter construction (PyTorch GRUCell/Linear layout) + kernel-layout prep
# ---------------------------------------------------------------------------
def init_raw_params(key, hidden):
    """PyTorch-shaped raw parameters (GRUCell(2,H) + Linear(H,2))."""
    k = jax.random.split(key, 6)
    bound = 1.0 / jnp.sqrt(hidden)
    return {
        "weight_ih": jax.random.uniform(k[0], (3 * hidden, 2), jnp.float32, -bound, bound),
        "weight_hh": jax.random.uniform(k[1], (3 * hidden, hidden), jnp.float32, -bound, bound),
        "bias_ih": jax.random.uniform(k[2], (3 * hidden,), jnp.float32, -bound, bound),
        "bias_hh": jax.random.uniform(k[3], (3 * hidden,), jnp.float32, -bound, bound),
        "weight_lin": jax.random.uniform(k[4], (2, hidden), jnp.float32, -bound, bound),
        "bias_lin": jax.random.uniform(k[5], (2,), jnp.float32, -bound, bound),
    }


def prepare_params(raw, hidden):
    """Repack PyTorch weights into lane-padded, gate-blocked kernel layout.

    NOTE: on v6e/v7x whh_t / w_pm could be stored in bf16 (f32 accumulation on
    the MXU) for extra throughput; kept f32 here to match the f32 reference.
    """
    H = hidden
    Hp = max(LANE, _round_up(H, LANE))
    w_ih, w_hh = raw["weight_ih"], raw["weight_hh"]
    b_ih, b_hh = raw["bias_ih"], raw["bias_hh"]
    w_lin, b_lin = raw["weight_lin"], raw["bias_lin"]

    def pad_cols(m):            # (X, H) -> (X, Hp)
        return jnp.pad(m, ((0, 0), (0, Hp - H)))

    def pad_hh(m):              # gate block (H, H) of w_hh -> (Hp, Hp), transposed
        return jnp.pad(m.T, ((0, Hp - H), (0, Hp - H)))

    def pad_vec(v):             # (H,) -> (1, Hp)
        return jnp.pad(v, (0, Hp - H)).reshape(1, Hp)

    # gate order r, z, n (PyTorch GRUCell)
    wih_t = jnp.concatenate([pad_cols(w_ih[0:H].T),
                             pad_cols(w_ih[H:2 * H].T),
                             pad_cols(w_ih[2 * H:3 * H].T)], axis=1)    # (2, 3Hp)
    whh_t = jnp.concatenate([pad_hh(w_hh[0:H]),
                             pad_hh(w_hh[H:2 * H]),
                             pad_hh(w_hh[2 * H:3 * H])], axis=1)        # (Hp, 3Hp)
    b_comb = jnp.concatenate([pad_vec(b_ih[0:H] + b_hh[0:H]),
                              pad_vec(b_ih[H:2 * H] + b_hh[H:2 * H]),
                              pad_vec(b_ih[2 * H:3 * H])], axis=1)      # (1, 3Hp)
    bhh_n = pad_vec(b_hh[2 * H:3 * H])                                  # (1, Hp)

    # softmax-as-sigmoid head
    w_diff = w_lin[1] - w_lin[0]                                        # (H,)
    b_diff = b_lin[1] - b_lin[0]
    w_pm = jnp.zeros((Hp, LANE), jnp.float32)
    w_pm = w_pm.at[:H, 0].set(-w_diff).at[:H, 1].set(w_diff)
    b_pm = jnp.full((1, LANE), -1e30, jnp.float32)
    b_pm = b_pm.at[0, 0].set(-b_diff).at[0, 1].set(b_diff)

    return {"Hp": Hp, "wih_t": wih_t, "whh_t": whh_t, "b_comb": b_comb,
            "bhh_n": bhh_n, "w_pm": w_pm, "b_pm": b_pm}


# ---------------------------------------------------------------------------
# pure-JAX reference (mirrors torch.nn.GRUCell + Linear + Softmax)
# ---------------------------------------------------------------------------
def reference_forward(spin, h, raw):
    H = h.shape[1]
    gi = spin @ raw["weight_ih"].T + raw["bias_ih"]
    gh = h @ raw["weight_hh"].T + raw["bias_hh"]
    r = jax.nn.sigmoid(gi[:, :H] + gh[:, :H])
    z = jax.nn.sigmoid(gi[:, H:2 * H] + gh[:, H:2 * H])
    n = jnp.tanh(gi[:, 2 * H:] + r * gh[:, 2 * H:])
    new_h = (1.0 - z) * n + z * h
    logits = new_h @ raw["weight_lin"].T + raw["bias_lin"]
    return new_h, jax.nn.softmax(logits, axis=1)


if __name__ == "__main__":
    batch = 8
    hidden = 32
    num_spins = 16   # sequence length exercised by the fused-loop kernel

    key = jax.random.PRNGKey(0)
    kp, ks, kh, kseq = jax.random.split(key, 4)

    raw = init_raw_params(kp, hidden)
    params = prepare_params(raw, hidden)

    # ---- single-step forward (== RNN.forward) ----
    spin_idx = jax.random.bernoulli(ks, 0.5, (batch,)).astype(jnp.int32)
    spin = jax.nn.one_hot(spin_idx, 2, dtype=jnp.float32)
    hidden_vec = jax.random.normal(kh, (batch, hidden), dtype=jnp.float32)

    new_h, probs = rnn_forward(spin, hidden_vec, params)
    jax.block_until_ready((new_h, probs))

    ref_h, ref_p = reference_forward(spin, hidden_vec, raw)
    assert new_h.shape == (batch, hidden) and probs.shape == (batch, 2)
    assert jnp.allclose(new_h, ref_h, atol=1e-5), "hidden mismatch"
    assert jnp.allclose(probs, ref_p, atol=1e-5), "prob mismatch"
    assert jnp.allclose(jnp.sum(probs, axis=1), 1.0, atol=1e-5)

    # ---- fused recurrent loop (whole sequence in one pallas_call) ----
    seq_idx = jax.random.bernoulli(kseq, 0.5, (num_spins, batch)).astype(jnp.int32)
    spins_seq = jax.nn.one_hot(seq_idx, 2, dtype=jnp.float32)     # (T, B, 2)
    h0 = jnp.zeros((batch, hidden), jnp.float32)

    probs_seq, hT = rnn_scan(spins_seq, h0, params)
    jax.block_until_ready((probs_seq, hT))

    h_ref = h0
    ref_probs = []
    for t in range(num_spins):
        h_ref, p_ref = reference_forward(spins_seq[t], h_ref, raw)
        ref_probs.append(p_ref)
    ref_probs = jnp.stack(ref_probs)
    assert jnp.allclose(hT, h_ref, atol=1e-4), "scan hidden mismatch"
    assert jnp.allclose(probs_seq, ref_probs, atol=1e-4), "scan prob mismatch"

    # TODO(synk): bernoulli sampling / enforce_symmetry / XY-energy helpers are
    # host-side control logic in the original module and stay outside the kernel.
    print("KERNEL_OK")
</pallas_src>

<mosaic_0001>
module attributes {stable_mosaic.version = 11 : i64} {
  func.func @_rnn_step_kernel(%arg0: i32, %arg1: memref<8x2xf32, #tpu.memory_space<vmem>>, %arg2: memref<8x128xf32, #tpu.memory_space<vmem>>, %arg3: memref<2x384xf32, #tpu.memory_space<vmem>>, %arg4: memref<128x384xf32, #tpu.memory_space<vmem>>, %arg5: memref<1x384xf32, #tpu.memory_space<vmem>>, %arg6: memref<1x128xf32, #tpu.memory_space<vmem>>, %arg7: memref<128x128xf32, #tpu.memory_space<vmem>>, %arg8: memref<1x128xf32, #tpu.memory_space<vmem>>, %arg9: memref<8x128xf32, #tpu.memory_space<vmem>>, %arg10: memref<8x128xf32, #tpu.memory_space<vmem>>) attributes {dimension_semantics = [#tpu.dimension_semantics<parallel>], iteration_bounds = array<i64: 1>, scalar_prefetch = 0 : i64, scratch_operands = 0 : i64, tpu.core_type = #tpu.core_type<tc>, window_params = [{transform_indices = @transform_0, window_bounds = array<i64: 8, 2>}, {transform_indices = @transform_1, window_bounds = array<i64: 8, 128>}, {pipeline_mode = #tpu.pipeline_mode<synchronous>, transform_indices = @transform_2, window_bounds = array<i64: 2, 384>}, {pipeline_mode = #tpu.pipeline_mode<synchronous>, transform_indices = @transform_3, window_bounds = array<i64: 128, 384>}, {pipeline_mode = #tpu.pipeline_mode<synchronous>, transform_indices = @transform_4, window_bounds = array<i64: 1, 384>}, {pipeline_mode = #tpu.pipeline_mode<synchronous>, transform_indices = @transform_5, window_bounds = array<i64: 1, 128>}, {pipeline_mode = #tpu.pipeline_mode<synchronous>, transform_indices = @transform_6, window_bounds = array<i64: 128, 128>}, {pipeline_mode = #tpu.pipeline_mode<synchronous>, transform_indices = @transform_7, window_bounds = array<i64: 1, 128>}, {transform_indices = @transform_8, window_bounds = array<i64: 8, 128>}, {transform_indices = @transform_9, window_bounds = array<i64: 8, 128>}]} {
    %c0 = arith.constant 0 : index
    %c0_0 = arith.constant 0 : index
    %0 = vector.load %arg1[%c0, %c0_0] : memref<8x2xf32, #tpu.memory_space<vmem>>, vector<8x2xf32>
    %c0_1 = arith.constant 0 : index
    %c0_2 = arith.constant 0 : index
    %1 = vector.load %arg2[%c0_1, %c0_2] : memref<8x128xf32, #tpu.memory_space<vmem>>, vector<8x128xf32>
    %c0_3 = arith.constant 0 : index
    %c0_4 = arith.constant 0 : index
    %2 = vector.load %arg3[%c0_3, %c0_4] : memref<2x384xf32, #tpu.memory_space<vmem>>, vector<2x384xf32>
    %c0_5 = arith.constant 0 : index
    %c0_6 = arith.constant 0 : index
    %3 = vector.load %arg4[%c0_5, %c0_6] : memref<128x384xf32, #tpu.memory_space<vmem>>, vector<128x384xf32>
    %c0_7 = arith.constant 0 : index
    %c0_8 = arith.constant 0 : index
    %4 = vector.load %arg5[%c0_7, %c0_8] : memref<1x384xf32, #tpu.memory_space<vmem>>, vector<1x384xf32>
    %c0_9 = arith.constant 0 : index
    %c0_10 = arith.constant 0 : index
    %5 = vector.load %arg6[%c0_9, %c0_10] : memref<1x128xf32, #tpu.memory_space<vmem>>, vector<1x128xf32>
    %c0_11 = arith.constant 0 : index
    %c0_12 = arith.constant 0 : index
    %6 = vector.load %arg7[%c0_11, %c0_12] : memref<128x128xf32, #tpu.memory_space<vmem>>, vector<128x128xf32>
    %c0_13 = arith.constant 0 : index
    %c0_14 = arith.constant 0 : index
    %7 = vector.load %arg8[%c0_13, %c0_14] : memref<1x128xf32, #tpu.memory_space<vmem>>, vector<1x128xf32>
    %8 = vector.extract_strided_slice %0 {offsets = [0, 0], sizes = [8, 1], strides = [1, 1]} : vector<8x2xf32> to vector<8x1xf32>
    %9 = vector.extract_strided_slice %0 {offsets = [0, 1], sizes = [8, 1], strides = [1, 1]} : vector<8x2xf32> to vector<8x1xf32>
    %10 = vector.extract_strided_slice %2 {offsets = [0, 0], sizes = [1, 384], strides = [1, 1]} : vector<2x384xf32> to vector<1x384xf32>
    %11 = vector.broadcast %8 : vector<8x1xf32> to vector<8x384xf32>
    %12 = vector.broadcast %10 : vector<1x384xf32> to vector<8x384xf32>
    %13 = arith.mulf %11, %12 : vector<8x384xf32>
    %14 = vector.extract_strided_slice %2 {offsets = [1, 0], sizes = [1, 384], strides = [1, 1]} : vector<2x384xf32> to vector<1x384xf32>
    %15 = vector.broadcast %9 : vector<8x1xf32> to vector<8x384xf32>
    %16 = vector.broadcast %14 : vector<1x384xf32> to vector<8x384xf32>
    %17 = arith.mulf %15, %16 : vector<8x384xf32>
    %18 = arith.addf %13, %17 : vector<8x384xf32>
    %19 = vector.broadcast %4 : vector<1x384xf32> to vector<8x384xf32>
    %20 = arith.addf %18, %19 : vector<8x384xf32>
    %cst = arith.constant dense<0.000000e+00> : vector<8x384xf32>
    %21 = tpu.matmul %1, %3, %cst {dimension_numbers = #tpu.dot_dimension_numbers<[1], [0], [0], [1], [0, 0, 1, 1], [], []>} : vector<8x128xf32>, vector<128x384xf32>, vector<8x384xf32> -> vector<8x384xf32>
    %22 = vector.extract_strided_slice %20 {offsets = [0, 0], sizes = [8, 128], strides = [1, 1]} : vector<8x384xf32> to vector<8x128xf32>
    %23 = vector.extract_strided_slice %21 {offsets = [0, 0], sizes = [8, 128], strides = [1, 1]} : vector<8x384xf32> to vector<8x128xf32>
    %24 = arith.addf %22, %23 : vector<8x128xf32>
    %25 = arith.negf %24 : vector<8x128xf32>
    %26 = math.exp %25 : vector<8x128xf32>
    %cst_15 = arith.constant 1.000000e+00 : f32
    %27 = vector.broadcast %cst_15 : f32 to vector<8x128xf32>
    %28 = arith.addf %27, %26 : vector<8x128xf32>
    %29 = arith.divf %27, %28 : vector<8x128xf32>
    %30 = vector.extract_strided_slice %20 {offsets = [0, 128], sizes = [8, 128], strides = [1, 1]} : vector<8x384xf32> to vector<8x128xf32>
    %31 = vector.extract_strided_slice %21 {offsets = [0, 128], sizes = [8, 128], strides = [1, 1]} : vector<8x384xf32> to vector<8x128xf32>
    %32 = arith.addf %30, %31 : vector<8x128xf32>
    %33 = arith.negf %32 : vector<8x128xf32>
    %34 = math.exp %33 : vector<8x128xf32>
    %cst_16 = arith.constant 1.000000e+00 : f32
    %35 = vector.broadcast %cst_16 : f32 to vector<8x128xf32>
    %36 = arith.addf %35, %34 : vector<8x128xf32>
    %37 = arith.divf %35, %36 : vector<8x128xf32>
    %38 = vector.extract_strided_slice %20 {offsets = [0, 256], sizes = [8, 128], strides = [1, 1]} : vector<8x384xf32> to vector<8x128xf32>
    %39 = vector.extract_strided_slice %21 {offsets = [0, 256], sizes = [8, 128], strides = [1, 1]} : vector<8x384xf32> to vector<8x128xf32>
    %40 = vector.broadcast %5 : vector<1x128xf32> to vector<8x128xf32>
    %41 = arith.addf %39, %40 : vector<8x128xf32>
    %42 = arith.mulf %29, %41 : vector<8x128xf32>
    %43 = arith.addf %38, %42 : vector<8x128xf32>
    %44 = math.tanh %43 : vector<8x128xf32>
    %cst_17 = arith.constant 1.000000e+00 : f32
    %45 = vector.broadcast %cst_17 : f32 to vector<8x128xf32>
    %46 = arith.subf %45, %37 : vector<8x128xf32>
    %47 = arith.mulf %46, %44 : vector<8x128xf32>
    %48 = arith.mulf %37, %1 : vector<8x128xf32>
    %49 = arith.addf %47, %48 : vector<8x128xf32>
    %cst_18 = arith.constant dense<0.000000e+00> : vector<8x128xf32>
    %50 = tpu.matmul %49, %6, %cst_18 {dimension_numbers = #tpu.dot_dimension_numbers<[1], [0], [0], [1], [0, 0, 1, 1], [], []>} : vector<8x128xf32>, vector<128x128xf32>, vector<8x128xf32> -> vector<8x128xf32>
    %51 = vector.broadcast %7 : vector<1x128xf32> to vector<8x128xf32>
    %52 = arith.addf %50, %51 : vector<8x128xf32>
    %53 = arith.negf %52 : vector<8x128xf32>
    %54 = math.exp %53 : vector<8x128xf32>
    %cst_19 = arith.constant 1.000000e+00 : f32
    %55 = vector.broadcast %cst_19 : f32 to vector<8x128xf32>
    %56 = arith.addf %55, %54 : vector<8x128xf32>
    %57 = arith.divf %55, %56 : vector<8x128xf32>
    %c0_20 = arith.constant 0 : index
    %c0_21 = arith.constant 0 : index
    %58 = vector.load %arg9[%c0_20, %c0_21] : memref<8x128xf32, #tpu.memory_space<vmem>>, vector<8x128xf32>
    tpu.vector_store %arg9[%c0_20, %c0_21], %49 {strides = array<i32>} : memref<8x128xf32, #tpu.memory_space<vmem>>, vector<8x128xf32>,
    %c0_22 = arith.constant 0 : index
    %c0_23 = arith.constant 0 : index
    %59 = vector.load %arg10[%c0_22, %c0_23] : memref<8x128xf32, #tpu.memory_space<vmem>>, vector<8x128xf32>
    tpu.vector_store %arg10[%c0_22, %c0_23], %57 {strides = array<i32>} : memref<8x128xf32, #tpu.memory_space<vmem>>, vector<8x128xf32>,
    return
  }
  func.func @transform_0(%arg0: i32) -> (i32, i32) {
    %c0_i32 = arith.constant 0 : i32
    %c0_i32_0 = arith.constant 0 : i32
    return %arg0, %c0_i32 : i32, i32
  }
  func.func @transform_1(%arg0: i32) -> (i32, i32) {
    %c0_i32 = arith.constant 0 : i32
    %c0_i32_0 = arith.constant 0 : i32
    return %arg0, %c0_i32 : i32, i32
  }
  func.func @transform_2(%arg0: i32) -> (i32, i32) {
    %c0_i32 = arith.constant 0 : i32
    %c0_i32_0 = arith.constant 0 : i32
    %c0_i32_1 = arith.constant 0 : i32
    return %c0_i32, %c0_i32_0 : i32, i32
  }
  func.func @transform_3(%arg0: i32) -> (i32, i32) {
    %c0_i32 = arith.constant 0 : i32
    %c0_i32_0 = arith.constant 0 : i32
    %c0_i32_1 = arith.constant 0 : i32
    return %c0_i32, %c0_i32_0 : i32, i32
  }
  func.func @transform_4(%arg0: i32) -> (i32, i32) {
    %c0_i32 = arith.constant 0 : i32
    %c0_i32_0 = arith.constant 0 : i32
    %c0_i32_1 = arith.constant 0 : i32
    return %c0_i32, %c0_i32_0 : i32, i32
  }
  func.func @transform_5(%arg0: i32) -> (i32, i32) {
    %c0_i32 = arith.constant 0 : i32
    %c0_i32_0 = arith.constant 0 : i32
    %c0_i32_1 = arith.constant 0 : i32
    return %c0_i32, %c0_i32_0 : i32, i32
  }
  func.func @transform_6(%arg0: i32) -> (i32, i32) {
    %c0_i32 = arith.constant 0 : i32
    %c0_i32_0 = arith.constant 0 : i32
    %c0_i32_1 = arith.constant 0 : i32
    return %c0_i32, %c0_i32_0 : i32, i32
  }
  func.func @transform_7(%arg0: i32) -> (i32, i32) {
    %c0_i32 = arith.constant 0 : i32
    %c0_i32_0 = arith.constant 0 : i32
    %c0_i32_1 = arith.constant 0 : i32
    return %c0_i32, %c0_i32_0 : i32, i32
  }
  func.func @transform_8(%arg0: i32) -> (i32, i32) {
    %c0_i32 = arith.constant 0 : i32
    %c0_i32_0 = arith.constant 0 : i32
    return %arg0, %c0_i32 : i32, i32
  }
  func.func @transform_9(%arg0: i32) -> (i32, i32) {
    %c0_i32 = arith.constant 0 : i32
    %c0_i32_0 = arith.constant 0 : i32
    return %arg0, %c0_i32 : i32, i32
  }
}

</mosaic_0001>

<llo_original>
// kernel: tpu_custom_call.1
$region0: #{tpu_custom_call.1}
  #allocation0 [shape = 'u32[]', space=smem, size = 0x4, offset = 0x4, fixed_abs, tag = 'smem constant byte address 0x4 - core index']
  #allocation1 [shape = 'u32[144,128]{1,0:T(1,128)}', space=vmem, size = 0x12000, scoped, tag = 'internal scratch']
  %s0 = inlined_call_operand.vmem [shape: f32[8,2], index: 0, kind: input, shape index: {}]
  %s1 = inlined_call_operand.vmem [shape: f32[8,128], index: 1, kind: input, shape index: {}]
  %s2 = inlined_call_operand.vmem [shape: f32[2,384], index: 2, kind: input, shape index: {}]
  %s3 = inlined_call_operand.hbm [shape: f32[128,384], index: 3, kind: input, shape index: {}]
  %s4 = inlined_call_operand.vmem [shape: f32[1,384], index: 4, kind: input, shape index: {}]
  %s5 = inlined_call_operand.vmem [shape: f32[1,128], index: 5, kind: input, shape index: {}]
  %s6 = inlined_call_operand.hbm [shape: f32[128,128], index: 6, kind: input, shape index: {}]
  %s7 = inlined_call_operand.vmem [shape: f32[1,128], index: 7, kind: input, shape index: {}]
  %s8 = inlined_call_operand.hbm [shape: f32[8,128], index: 8, kind: output, shape index: {0}]
  %s9 = inlined_call_operand.hbm [shape: f32[8,128], index: 9, kind: output, shape index: {1}]
  %10 = xla_tuple %s8, %s9
  %s11 = sld [smem:[#allocation0]]
  $region58: #{tpu_custom_call.1} parent=0
    _
  %s13 = ssub.s32 1, %s11
  %s14 = scalar_select 0, %s13, %s11
  $region1: #{tpu_custom_call.1} parent=0
    #allocation2 [shape = 'u8[196608]{0}', space=vmem, size = 0x30000, scoped, tag = 'input window, operand 3, single buffered']
    #allocation3 [shape = 's32[1]{0}', space=sflag, size = 0x4, scoped, tag = 'scoped memory for tpu_custom_call.1']
    #allocation4 [shape = 's32[1]{0}', space=sflag, size = 0x4, scoped, tag = 'scoped memory for tpu_custom_call.1']
    #allocation5 [shape = 'u8[65536]{0}', space=vmem, size = 0x10000, scoped, tag = 'input window, operand 6, single buffered']
    #allocation6 [shape = 's32[1]{0}', space=sflag, size = 0x4, scoped, tag = 'scoped memory for tpu_custom_call.1']
    #allocation7 [shape = 'u8[4096]{0}', space=vmem, size = 0x1000, scoped, tag = 'output window, operand 0, single buffered']
    #allocation8 [shape = 'u8[4096]{0}', space=vmem, size = 0x1000, scoped, tag = 'output window, operand 1, single buffered']
    #allocation9 [shape = 's32[1]{0}', space=sflag, size = 0x4, scoped, tag = 'scoped memory for tpu_custom_call.1']
    %15 = vsyncpa [#allocation3], 0
    %16 = vsyncpa [#allocation6], 0
    %17 = vsyncpa [#allocation4], 0
    %18 = vsyncpa [#allocation9], 0
    // Predicated region
    $region2: #{tpu_custom_call.1} parent=1 // pred_check
      _
    $region3: #{tpu_custom_call.1} parent=1 // pred_check_branch
      %20 = sbr.rel (0) target = $region5
    $region4: #{tpu_custom_call.1} parent=1 // pred_region
      _
    $region5: #{tpu_custom_call.1} parent=1 // pred_fallthru
      _
    // Predicated region
    $region6: #{tpu_custom_call.1} parent=1 // pred_check
      _
    $region7: #{tpu_custom_call.1} parent=1 // pred_check_branch
      %22 = sbr.rel (0) target = $region9
    $region8: #{tpu_custom_call.1} parent=1 // pred_region
      _
    $region9: #{tpu_custom_call.1} parent=1 // pred_fallthru
      _
    // Predicated region
    $region10: #{tpu_custom_call.1} parent=1 // pred_check
      _
    $region11: #{tpu_custom_call.1} parent=1 // pred_check_branch
      %24 = sbr.rel (0) target = $region13
    $region12: #{tpu_custom_call.1} parent=1 // pred_region
      _
    $region13: #{tpu_custom_call.1} parent=1 // pred_fallthru
      _
    // Predicated region
    $region14: #{tpu_custom_call.1} parent=1 // pred_check
      _
    $region15: #{tpu_custom_call.1} parent=1 // pred_check_branch
      %26 = sbr.rel (0) target = $region17
    $region16: #{tpu_custom_call.1} parent=1 // pred_region
      %s28 = ssub.s32 6144, 6144
      %29 = vsyncadd [#allocation3], %s28
      %s30 = sshll.u32 [#allocation2], 4
      %s31 = int_to_ptr.vmem [resolvable:$true] %s30
      %36 = dma.hbm_to_vmem [thread:$0]  %s3, 6144, %s31, [#allocation3], 384, 384, 24
    $region17: #{tpu_custom_call.1} parent=1 // pred_fallthru
      _
    // Predicated region
    $region18: #{tpu_custom_call.1} parent=1 // pred_check
      _
    $region19: #{tpu_custom_call.1} parent=1 // pred_check_branch
      %38 = sbr.rel (0) target = $region21
    $region20: #{tpu_custom_call.1} parent=1 // pred_region
      _
    $region21: #{tpu_custom_call.1} parent=1 // pred_fallthru
      _
    // Predicated region
    $region22: #{tpu_custom_call.1} parent=1 // pred_check
      _
    $region23: #{tpu_custom_call.1} parent=1 // pred_check_branch
      %40 = sbr.rel (0) target = $region25
    $region24: #{tpu_custom_call.1} parent=1 // pred_region
      _
    $region25: #{tpu_custom_call.1} parent=1 // pred_fallthru
      _
    // Predicated region
    $region26: #{tpu_custom_call.1} parent=1 // pred_check
      _
    $region27: #{tpu_custom_call.1} parent=1 // pred_check_branch
      %42 = sbr.rel (0) target = $region29
    $region28: #{tpu_custom_call.1} parent=1 // pred_region
      %s44 = ssub.s32 2048, 2048
      %45 = vsyncadd [#allocation6], %s44
      %s46 = sshll.u32 [#allocation5], 4
      %s47 = int_to_ptr.vmem [resolvable:$true] %s46
      %52 = dma.hbm_to_vmem [thread:$0]  %s6, 2048, %s47, [#allocation6], 128, 128, 8
    $region29: #{tpu_custom_call.1} parent=1 // pred_fallthru
      _
    // Predicated region
    $region30: #{tpu_custom_call.1} parent=1 // pred_check
      _
    $region31: #{tpu_custom_call.1} parent=1 // pred_check_branch
      %54 = sbr.rel (0) target = $region33
    $region32: #{tpu_custom_call.1} parent=1 // pred_region
      _
    $region33: #{tpu_custom_call.1} parent=1 // pred_fallthru
      _
    // Predicated region
    $region34: #{tpu_custom_call.1} parent=1 // pred_check
      _
    $region35: #{tpu_custom_call.1} parent=1 // pred_check_branch
      %56 = sbr.rel (0) target = $region37
    $region36: #{tpu_custom_call.1} parent=1 // pred_region
      %57 = dma.done [#allocation3], 6144
    $region37: #{tpu_custom_call.1} parent=1 // pred_fallthru
      _
    // Predicated region
    $region38: #{tpu_custom_call.1} parent=1 // pred_check
      _
    $region39: #{tpu_custom_call.1} parent=1 // pred_check_branch
      %59 = sbr.rel (0) target = $region41
    $region40: #{tpu_custom_call.1} parent=1 // pred_region
      %60 = dma.done [#allocation6], 2048
    $region41: #{tpu_custom_call.1} parent=1 // pred_fallthru
      _
    %v61 = vld [vmem:[%s0] sm:$0xff]
    %v62 = vld [vmem:[%s1] sm:$0xff]
    %v63 = vld [vmem:[%s2] sm:$0x3f]
    %v64 = vld [vmem:[#allocation2] sm:$0xff]
    %v65 = vld [vmem:[#allocation2 + $0x8] sm:$0xff]
    %v66 = vld [vmem:[#allocation2 + $0x10] sm:$0xff]
    %v67 = vld [vmem:[#allocation2 + $0x18] sm:$0xff]
    %v68 = vld [vmem:[#allocation2 + $0x20] sm:$0xff]
    %v69 = vld [vmem:[#allocation2 + $0x28] sm:$0xff]
    %v70 = vld [vmem:[#allocation2 + $0x30] sm:$0xff]
    %v71 = vld [vmem:[#allocation2 + $0x38] sm:$0xff]
    %v72 = vld [vmem:[#allocation2 + $0x40] sm:$0xff]
    %v73 = vld [vmem:[#allocation2 + $0x48] sm:$0xff]
    %v74 = vld [vmem:[#allocation2 + $0x50] sm:$0xff]
    %v75 = vld [vmem:[#allocation2 + $0x58] sm:$0xff]
    %v76 = vld [vmem:[#allocation2 + $0x60] sm:$0xff]
    %v77 = vld [vmem:[#allocation2 + $0x68] sm:$0xff]
    %v78 = vld [vmem:[#allocation2 + $0x70] sm:$0xff]
    %v79 = vld [vmem:[#allocation2 + $0x78] sm:$0xff]
    %v80 = vld [vmem:[#allocation2 + $0x80] sm:$0xff]
    %v81 = vld [vmem:[#allocation2 + $0x88] sm:$0xff]
    %v82 = vld [vmem:[#allocation2 + $0x90] sm:$0xff]
    %v83 = vld [vmem:[#allocation2 + $0x98] sm:$0xff]
    %v84 = vld [vmem:[#allocation2 + $0xa0] sm:$0xff]
    %v85 = vld [vmem:[#allocation2 + $0xa8] sm:$0xff]
    %v86 = vld [vmem:[#allocation2 + $0xb0] sm:$0xff]
    %v87 = vld [vmem:[#allocation2 + $0xb8] sm:$0xff]
    %v88 = vld [vmem:[#allocation2 + $0xc0] sm:$0xff]
    %v89 = vld [vmem:[#allocation2 + $0xc8] sm:$0xff]
    %v90 = vld [vmem:[#allocation2 + $0xd0] sm:$0xff]
    %v91 = vld [vmem:[#allocation2 + $0xd8] sm:$0xff]
    %v92 = vld [vmem:[#allocation2 + $0xe0] sm:$0xff]
    %v93 = vld [vmem:[#allocation2 + $0xe8] sm:$0xff]
    %v94 = vld [vmem:[#allocation2 + $0xf0] sm:$0xff]
    %v95 = vld [vmem:[#allocation2 + $0xf8] sm:$0xff]
    %v96 = vld [vmem:[#allocation2 + $0x100] sm:$0xff]
    %v97 = vld [vmem:[#allocation2 + $0x108] sm:$0xff]
    %v98 = vld [vmem:[#allocation2 + $0x110] sm:$0xff]
    %v99 = vld [vmem:[#allocation2 + $0x118] sm:$0xff]
    %v100 = vld [vmem:[#allocation2 + $0x120] sm:$0xff]
    %v101 = vld [vmem:[#allocation2 + $0x128] sm:$0xff]
    %v102 = vld [vmem:[#allocation2 + $0x130] sm:$0xff]
    %v103 = vld [vmem:[#allocation2 + $0x138] sm:$0xff]
    %v104 = vld [vmem:[#allocation2 + $0x140] sm:$0xff]
    %v105 = vld [vmem:[#allocation2 + $0x148] sm:$0xff]
    %v106 = vld [vmem:[#allocation2 + $0x150] sm:$0xff]
    %v107 = vld [vmem:[#allocation2 + $0x158] sm:$0xff]
    %v108 = vld [vmem:[#allocation2 + $0x160] sm:$0xff]
    %v109 = vld [vmem:[#allocation2 + $0x168] sm:$0xff]
    %v110 = vld [vmem:[#allocation2 + $0x170] sm:$0xff]
    %v111 = vld [vmem:[#allocation2 + $0x178] sm:$0xff]
    %v112 = vld [vmem:[%s4] sm:$0x7]
    %v113 = vld [vmem:[%s5] sm:$0x1]
    %v114 = vld [vmem:[#allocation5] sm:$0xff]
    %v115 = vld [vmem:[#allocation5 + $0x8] sm:$0xff]
    %v116 = vld [vmem:[#allocation5 + $0x10] sm:$0xff]
    %v117 = vld [vmem:[#allocation5 + $0x18] sm:$0xff]
    %v118 = vld [vmem:[#allocation5 + $0x20] sm:$0xff]
    %v119 = vld [vmem:[#allocation5 + $0x28] sm:$0xff]
    %v120 = vld [vmem:[#allocation5 + $0x30] sm:$0xff]
    %v121 = vld [vmem:[#allocation5 + $0x38] sm:$0xff]
    %v122 = vld [vmem:[#allocation5 + $0x40] sm:$0xff]
    %v123 = vld [vmem:[#allocation5 + $0x48] sm:$0xff]
    %v124 = vld [vmem:[#allocation5 + $0x50] sm:$0xff]
    %v125 = vld [vmem:[#allocation5 + $0x58] sm:$0xff]
    %v126 = vld [vmem:[#allocation5 + $0x60] sm:$0xff]
    %v127 = vld [vmem:[#allocation5 + $0x68] sm:$0xff]
    %v128 = vld [vmem:[#allocation5 + $0x70] sm:$0xff]
    %v129 = vld [vmem:[#allocation5 + $0x78] sm:$0xff]
    %v130 = vld [vmem:[%s7] sm:$0x1]
    %132 = vset.pattern.permute.xlu0 0
    %133 = vperm.xlu0 %132, %v61
    %v134 = vpop.permute.xlu0 %133
    %v137 = vlaneseq
    %v138 = vshrl.u32 %v137, 7
    %v139 = vsub.s32 0, %v138
    %v140 = vrot.slane %v63, %v139
    %v141 = vlaneseq
    %v142 = vshrl.u32 %v141, 7
    %v143 = vsub.s32 2, %v142
    %v144 = vrot.slane %v63, %v143
    %v145 = vlaneseq
    %v146 = vshrl.u32 %v145, 7
    %v147 = vsub.s32 4, %v146
    %v148 = vrot.slane %v63, %v147
    %v152 = vlaneseq
    %v153 = vshrl.u32 %v152, 7
    %v154 = vsub.s32 0, %v153
    %v155 = vrot.slane %v140, %v154
    %v156 = vlaneseq
    %v157 = vshrl.u32 %v156, 7
    %v158 = vsub.s32 0, %v157
    %v159 = vrot.slane %v144, %v158
    %v160 = vlaneseq
    %v161 = vshrl.u32 %v160, 7
    %v162 = vsub.s32 0, %v161
    %v163 = vrot.slane %v148, %v162
    %v164 = vmul.f32 %v134, %v155
    %v165 = vmul.f32 %v134, %v159
    %v166 = vmul.f32 %v134, %v163
    %167 = vset.pattern.permute.xlu0 1
    %168 = vperm.xlu0 %167, %v61
    %v169 = vpop.permute.xlu0 %168
    %v171 = vlaneseq
    %v172 = vshrl.u32 %v171, 7
    %v173 = vsub.s32 1, %v172
    %v174 = vrot.slane %v63, %v173
    %v175 = vlaneseq
    %v176 = vshrl.u32 %v175, 7
    %v177 = vsub.s32 3, %v176
    %v178 = vrot.slane %v63, %v177
    %v179 = vlaneseq
    %v180 = vshrl.u32 %v179, 7
    %v181 = vsub.s32 5, %v180
    %v182 = vrot.slane %v63, %v181
    %v186 = vlaneseq
    %v187 = vshrl.u32 %v186, 7
    %v188 = vsub.s32 1, %v187
    %v189 = vrot.slane %v174, %v188
    %v190 = vlaneseq
    %v191 = vshrl.u32 %v190, 7
    %v192 = vsub.s32 1, %v191
    %v193 = vrot.slane %v178, %v192
    %v194 = vlaneseq
    %v195 = vshrl.u32 %v194, 7
    %v196 = vsub.s32 1, %v195
    %v197 = vrot.slane %v182, %v196
    %v198 = vmul.f32 %v169, %v189
    %v199 = vmul.f32 %v169, %v193
    %v200 = vmul.f32 %v169, %v197
    %v201 = vadd.f32 %v164, %v198
    %v202 = vadd.f32 %v165, %v199
    %v203 = vadd.f32 %v166, %v200
    %v205 = vlaneseq
    %v206 = vshrl.u32 %v205, 7
    %v207 = vsub.s32 0, %v206
    %v208 = vrot.slane %v112, %v207
    %v209 = vlaneseq
    %v210 = vshrl.u32 %v209, 7
    %v211 = vsub.s32 1, %v210
    %v212 = vrot.slane %v112, %v211
    %v213 = vlaneseq
    %v214 = vshrl.u32 %v213, 7
    %v215 = vsub.s32 2, %v214
    %v216 = vrot.slane %v112, %v215
    %v220 = vadd.f32 %v201, %v208
    %v221 = vadd.f32 %v202, %v212
    %v222 = vadd.f32 %v203, %v216
    %223 = vmatprep.subr.mxu0 %v65
    %224 = vmatpush1.msra.mxu0 %v64
    %225 = vmatprep.subr.mxu0 %v68
    %226 = vmatpush1.msra.mxu0 %v67
    %227 = vmatprep.subr.mxu0 %v71
    %228 = vmatpush1.msra.mxu0 %v70
    %229 = vmatprep.subr.mxu0 %v74
    %230 = vmatpush1.msra.mxu0 %v73
    %231 = vmatprep.subr.mxu0 %v77
    %232 = vmatpush1.msra.mxu0 %v76
    %233 = vmatprep.subr.mxu0 %v80
    %234 = vmatpush1.msra.mxu0 %v79
    %235 = vmatprep.subr.mxu0 %v83
    %236 = vmatpush1.msra.mxu0 %v82
    %237 = vmatprep.subr.mxu0 %v86
    %238 = vmatpush1.msra.mxu0 %v85
    %239 = vmatprep.subr.mxu0 %v89
    %240 = vmatpush1.msra.mxu0 %v88
    %241 = vmatprep.subr.mxu0 %v92
    %242 = vmatpush1.msra.mxu0 %v91
    %243 = vmatprep.subr.mxu0 %v95
    %244 = vmatpush1.msra.mxu0 %v94
    %245 = vmatprep.subr.mxu0 %v98
    %246 = vmatpush1.msra.mxu0 %v97
    %247 = vmatprep.subr.mxu0 %v101
    %248 = vmatpush1.msra.mxu0 %v100
    %249 = vmatprep.subr.mxu0 %v104
    %250 = vmatpush1.msra.mxu0 %v103
    %251 = vmatprep.subr.mxu0 %v107
    %252 = vmatpush1.msra.mxu0 %v106
    %253 = vmatprep.subr.mxu0 %v110
    %254 = vmatpush1.msra.mxu0 %v109
    %255 = vmatprep.subr.mxu0 0.0
    %256 = vmatpush1.msra.mxu0 0.0
    %257 = vmatprep.subr.mxu0 0.0
    %258 = vmatpush1.msra.mxu0 0.0
    %259 = vmatprep.subr.mxu0 0.0
    %260 = vmatpush1.msra.mxu0 0.0
    %261 = vmatprep.subr.mxu0 0.0
    %262 = vmatpush1.msra.mxu0 0.0
    %263 = vmatprep.subr.mxu0 0.0
    %264 = vmatpush1.msra.mxu0 0.0
    %265 = vmatprep.subr.mxu0 0.0
    %266 = vmatpush1.msra.mxu0 0.0
    %267 = vmatprep.subr.mxu0 0.0
    %268 = vmatpush1.msra.mxu0 0.0
    %269 = vmatprep.subr.mxu0 0.0
    %270 = vmatpush1.msra.mxu0 0.0
    %271 = vmatprep.subr.mxu0 0.0
    %272 = vmatpush1.msra.mxu0 0.0
    %273 = vmatprep.subr.mxu0 0.0
    %274 = vmatpush1.msra.mxu0 0.0
    %275 = vmatprep.subr.mxu0 0.0
    %276 = vmatpush1.msra.mxu0 0.0
    %277 = vmatprep.subr.mxu0 0.0
    %278 = vmatpush1.msra.mxu0 0.0
    %279 = vmatprep.subr.mxu0 0.0
    %280 = vmatpush1.msra.mxu0 0.0
    %281 = vmatprep.subr.mxu0 0.0
    %282 = vmatpush1.msra.mxu0 0.0
    %283 = vmatprep.subr.mxu0 0.0
    %284 = vmatpush1.msra.mxu0 0.0
    %285 = vmatprep.subr.mxu0 0.0
    %286 = vmatpush1.msra.mxu0 0.0
    %287 = vmatprep.mubr.f32.mxu0 0.0
    %288 = vmatmul.mubr.f32.gmra.mrb[0].mxu0 %v62
    %v289 = vpop.f32.mrb[0].mxu0
    %v290 = vadd.f32 0.0, %v289
    %v291 = vpop.f32.mrb[0].mxu0
    %v292 = vadd.f32 0.0, %v291
    %293 = vdwg.mxu0
    %294 = vmatprep.subr.mxu0 0.0
    %295 = vmatpush1.msra.mxu0 %v66
    %296 = vmatprep.subr.mxu0 0.0
    %297 = vmatpush1.msra.mxu0 %v69
    %298 = vmatprep.subr.mxu0 0.0
    %299 = vmatpush1.msra.mxu0 %v72
    %300 = vmatprep.subr.mxu0 0.0
    %301 = vmatpush1.msra.mxu0 %v75
    %302 = vmatprep.subr.mxu0 0.0
    %303 = vmatpush1.msra.mxu0 %v78
    %304 = vmatprep.subr.mxu0 0.0
    %305 = vmatpush1.msra.mxu0 %v81
    %306 = vmatprep.subr.mxu0 0.0
    %307 = vmatpush1.msra.mxu0 %v84
    %308 = vmatprep.subr.mxu0 0.0
    %309 = vmatpush1.msra.mxu0 %v87
    %310 = vmatprep.subr.mxu0 0.0
    %311 = vmatpush1.msra.mxu0 %v90
    %312 = vmatprep.subr.mxu0 0.0
    %313 = vmatpush1.msra.mxu0 %v93
    %314 = vmatprep.subr.mxu0 0.0
    %315 = vmatpush1.msra.mxu0 %v96
    %316 = vmatprep.subr.mxu0 0.0
    %317 = vmatpush1.msra.mxu0 %v99
    %318 = vmatprep.subr.mxu0 0.0
    %319 = vmatpush1.msra.mxu0 %v102
    %320 = vmatprep.subr.mxu0 0.0
    %321 = vmatpush1.msra.mxu0 %v105
    %322 = vmatprep.subr.mxu0 0.0
    %323 = vmatpush1.msra.mxu0 %v108
    %324 = vmatprep.subr.mxu0 0.0
    %325 = vmatpush1.msra.mxu0 %v111
    %326 = vmatprep.subr.mxu0 0.0
    %327 = vmatpush1.msra.mxu0 0.0
    %328 = vmatprep.subr.mxu0 0.0
    %329 = vmatpush1.msra.mxu0 0.0
    %330 = vmatprep.subr.mxu0 0.0
    %331 = vmatpush1.msra.mxu0 0.0
    %332 = vmatprep.subr.mxu0 0.0
    %333 = vmatpush1.msra.mxu0 0.0
    %334 = vmatprep.subr.mxu0 0.0
    %335 = vmatpush1.msra.mxu0 0.0
    %336 = vmatprep.subr.mxu0 0.0
    %337 = vmatpush1.msra.mxu0 0.0
    %338 = vmatprep.subr.mxu0 0.0
    %339 = vmatpush1.msra.mxu0 0.0
    %340 = vmatprep.subr.mxu0 0.0
    %341 = vmatpush1.msra.mxu0 0.0
    %342 = vmatprep.subr.mxu0 0.0
    %343 = vmatpush1.msra.mxu0 0.0
    %344 = vmatprep.subr.mxu0 0.0
    %345 = vmatpush1.msra.mxu0 0.0
    %346 = vmatprep.subr.mxu0 0.0
    %347 = vmatpush1.msra.mxu0 0.0
    %348 = vmatprep.subr.mxu0 0.0
    %349 = vmatpush1.msra.mxu0 0.0
    %350 = vmatprep.subr.mxu0 0.0
    %351 = vmatpush1.msra.mxu0 0.0
    %352 = vmatprep.subr.mxu0 0.0
    %353 = vmatpush1.msra.mxu0 0.0
    %354 = vmatprep.subr.mxu0 0.0
    %355 = vmatpush1.msra.mxu0 0.0
    %356 = vmatprep.subr.mxu0 0.0
    %357 = vmatpush1.msra.mxu0 0.0
    %358 = vmatprep.mubr.f32.mxu0 0.0
    %359 = vmatmul.mubr.f32.gmra.mrb[0].mxu0 %v62
    %v360 = vpop.f32.mrb[0].mxu0
    %v361 = vadd.f32 0.0, %v360
    %v362 = vpop.f32.mrb[0].mxu0
    %363 = vdwg.mxu0
    %v364 = vadd.f32 %v220, %v290
    %v365 = vxor.u32 %v364, 2147483648
    %v366 = vmul.f32 %v365, 1.442695
    %v367 = vpow.pop %v366
    %v368 = vadd.f32 %v367, 1.0
    %v369 = vrcp.pop %v368
    %v370 = vmul.f32 1.0, %v369
    %v371 = vadd.f32 %v221, %v292
    %v372 = vxor.u32 %v371, 2147483648
    %v373 = vmul.f32 %v372, 1.442695
    %v374 = vpow.pop %v373
    %v375 = vadd.f32 %v374, 1.0
    %v376 = vrcp.pop %v375
    %v377 = vmul.f32 1.0, %v376
    %v379 = vlaneseq
    %v380 = vshrl.u32 %v379, 7
    %v381 = vsub.s32 0, %v380
    %v382 = vrot.slane %v113, %v381
    %v384 = vadd.f32 %v361, %v382
    %v385 = vmul.f32 %v370, %v384
    %v386 = vadd.f32 %v222, %v385
    %v387 = vtanh.pop %v386
    %v388 = vsub.f32 1.0, %v377
    %v389 = vmul.f32 %v388, %v387
    %v390 = vmul.f32 %v377, %v62
    %v391 = vadd.f32 %v389, %v390
    %v393 = vlaneseq
    %v394 = vshrl.u32 %v393, 7
    %v395 = vsub.s32 0, %v394
    %v396 = vrot.slane %v130, %v395
    %398 = vmatprep.subr.mxu0 0.0
    %399 = vmatpush1.msra.mxu0 %v114
    %400 = vmatprep.subr.mxu0 0.0
    %401 = vmatpush1.msra.mxu0 %v115
    %402 = vmatprep.subr.mxu0 0.0
    %403 = vmatpush1.msra.mxu0 %v116
    %404 = vmatprep.subr.mxu0 0.0
    %405 = vmatpush1.msra.mxu0 %v117
    %406 = vmatprep.subr.mxu0 0.0
    %407 = vmatpush1.msra.mxu0 %v118
    %408 = vmatprep.subr.mxu0 0.0
    %409 = vmatpush1.msra.mxu0 %v119
    %410 = vmatprep.subr.mxu0 0.0
    %411 = vmatpush1.msra.mxu0 %v120
    %412 = vmatprep.subr.mxu0 0.0
    %413 = vmatpush1.msra.mxu0 %v121
    %414 = vmatprep.subr.mxu0 0.0
    %415 = vmatpush1.msra.mxu0 %v122
    %416 = vmatprep.subr.mxu0 0.0
    %417 = vmatpush1.msra.mxu0 %v123
    %418 = vmatprep.subr.mxu0 0.0
    %419 = vmatpush1.msra.mxu0 %v124
    %420 = vmatprep.subr.mxu0 0.0
    %421 = vmatpush1.msra.mxu0 %v125
    %422 = vmatprep.subr.mxu0 0.0
    %423 = vmatpush1.msra.mxu0 %v126
    %424 = vmatprep.subr.mxu0 0.0
    %425 = vmatpush1.msra.mxu0 %v127
    %426 = vmatprep.subr.mxu0 0.0
    %427 = vmatpush1.msra.mxu0 %v128
    %428 = vmatprep.subr.mxu0 0.0
    %429 = vmatpush1.msra.mxu0 %v129
    %430 = vmatprep.subr.mxu0 0.0
    %431 = vmatpush1.msra.mxu0 0.0
    %432 = vmatprep.subr.mxu0 0.0
    %433 = vmatpush1.msra.mxu0 0.0
    %434 = vmatprep.subr.mxu0 0.0
    %435 = vmatpush1.msra.mxu0 0.0
    %436 = vmatprep.subr.mxu0 0.0
    %437 = vmatpush1.msra.mxu0 0.0
    %438 = vmatprep.subr.mxu0 0.0
    %439 = vmatpush1.msra.mxu0 0.0
    %440 = vmatprep.subr.mxu0 0.0
    %441 = vmatpush1.msra.mxu0 0.0
    %442 = vmatprep.subr.mxu0 0.0
    %443 = vmatpush1.msra.mxu0 0.0
    %444 = vmatprep.subr.mxu0 0.0
    %445 = vmatpush1.msra.mxu0 0.0
    %446 = vmatprep.subr.mxu0 0.0
    %447 = vmatpush1.msra.mxu0 0.0
    %448 = vmatprep.subr.mxu0 0.0
    %449 = vmatpush1.msra.mxu0 0.0
    %450 = vmatprep.subr.mxu0 0.0
    %451 = vmatpush1.msra.mxu0 0.0
    %452 = vmatprep.subr.mxu0 0.0
    %453 = vmatpush1.msra.mxu0 0.0
    %454 = vmatprep.subr.mxu0 0.0
    %455 = vmatpush1.msra.mxu0 0.0
    %456 = vmatprep.subr.mxu0 0.0
    %457 = vmatpush1.msra.mxu0 0.0
    %458 = vmatprep.subr.mxu0 0.0
    %459 = vmatpush1.msra.mxu0 0.0
    %460 = vmatprep.subr.mxu0 0.0
    %461 = vmatpush1.msra.mxu0 0.0
    %462 = vmatprep.mubr.f32.mxu0 0.0
    %463 = vmatmul.mubr.f32.gmra.mrb[0].mxu0 %v391
    %v464 = vpop.f32.mrb[0].mxu0
    %v465 = vadd.f32 %v396, %v464
    %v466 = vpop.f32.mrb[0].mxu0
    %467 = vdwg.mxu0
    %v468 = vxor.u32 %v465, 2147483648
    %v469 = vmul.f32 %v468, 1.442695
    %v470 = vpow.pop %v469
    %v471 = vadd.f32 %v470, 1.0
    %v472 = vrcp.pop %v471
    %v473 = vmul.f32 1.0, %v472
    %474 = vst [vmem:[#allocation7] sm:$0xff] %v391
    %475 = vst [vmem:[#allocation8] sm:$0xff] %v473
    // Predicated region
    $region42: #{tpu_custom_call.1} parent=1 // pred_check
      _
    $region43: #{tpu_custom_call.1} parent=1 // pred_check_branch
      %477 = sbr.rel (0) target = $region45
    $region44: #{tpu_custom_call.1} parent=1 // pred_region
      %s479 = ssub.s32 128, 128
      %480 = vsyncadd [#allocation4], %s479
      %s482 = sshll.u32 [#allocation7], 4
      %s483 = int_to_ptr.vmem [resolvable:$true] %s482
      %485 = dma.vmem_to_hbm [thread:$0]  %s483, 128, %s8, [#allocation4]
    $region45: #{tpu_custom_call.1} parent=1 // pred_fallthru
      _
    // Predicated region
    $region46: #{tpu_custom_call.1} parent=1 // pred_check
      _
    $region47: #{tpu_custom_call.1} parent=1 // pred_check_branch
      %487 = sbr.rel (0) target = $region49
    $region48: #{tpu_custom_call.1} parent=1 // pred_region
      %s489 = ssub.s32 128, 128
      %490 = vsyncadd [#allocation9], %s489
      %s492 = sshll.u32 [#allocation8], 4
      %s493 = int_to_ptr.vmem [resolvable:$true] %s492
      %495 = dma.vmem_to_hbm [thread:$0]  %s493, 128, %s9, [#allocation9]
    $region49: #{tpu_custom_call.1} parent=1 // pred_fallthru
      _
    // Predicated region
    $region50: #{tpu_custom_call.1} parent=1 // pred_check
      _
    $region51: #{tpu_custom_call.1} parent=1 // pred_check_branch
      %497 = sbr.rel (0) target = $region53
    $region52: #{tpu_custom_call.1} parent=1 // pred_region
      %498 = dma.done [#allocation4], 128
    $region53: #{tpu_custom_call.1} parent=1 // pred_fallthru
      _
    // Predicated region
    $region54: #{tpu_custom_call.1} parent=1 // pred_check
      _
    $region55: #{tpu_custom_call.1} parent=1 // pred_check_branch
      %500 = sbr.rel (0) target = $region57
    $region56: #{tpu_custom_call.1} parent=1 // pred_region
      %501 = dma.done [#allocation9], 128
    $region57: #{tpu_custom_call.1} parent=1 // pred_fallthru
      _
    %502 = vsyncpa [#allocation3], 1
    %503 = vsyncpa [#allocation6], 1
    %504 = vsyncpa [#allocation4], 1
    %505 = vsyncpa [#allocation9], 1

</llo_original>
